<compile_context>
chip_gen: v7x
topology: tpu7x:2x2x1
jax: 0.10.0
libtpu: 0.0.40
codegen_flags: <defaults>
</compile_context>

<pallas_src>
import functools

import jax
import jax.numpy as jnp
from jax.experimental import pallas as pl
from jax.experimental.pallas import tpu as pltpu


# --------------------------------------------------------------------------- #
# Kernel
# --------------------------------------------------------------------------- #
def swiglu_mlp_kernel(x_ref, wg_ref, wu_ref, bg_ref, bu_ref, wd_ref, bd_ref,
                      o_ref):
    """One (row-tile, hidden-chunk) step of the fused SwiGLU MLP.

    Grid = (row tiles, hidden chunks); hidden axis is the reduction, so the
    (tm, C) f32 output block stays resident across it and acts as the
    accumulator (no separate VMEM scratch needed).
    """
    h = pl.program_id(1)

    x = x_ref[...]                                                   # (tm, C) bf16
    # gate / up projections for this hidden chunk (MXU, f32 accumulation)
    gate = jnp.dot(x, wg_ref[...], preferred_element_type=jnp.float32) + bg_ref[...]
    up = jnp.dot(x, wu_ref[...], preferred_element_type=jnp.float32) + bu_ref[...]
    # SwiGLU: silu(up) * gate, kept in f32 on the VPU/EUP (v5e has no bf16 VPU path)
    hidden = gate * (up * jax.nn.sigmoid(up))                        # (tm, th) f32
    # partial down-projection for this chunk
    partial = jnp.dot(hidden.astype(wd_ref.dtype), wd_ref[...],
                      preferred_element_type=jnp.float32)            # (tm, C) f32

    @pl.when(h == 0)
    def _():
        # first chunk: initialize the resident output block (bias added once here)
        o_ref[...] = partial + bd_ref[...]

    @pl.when(h > 0)
    def _():
        o_ref[...] += partial
    # TODO(synk): training-mode dropout (inference semantics here -> identity)


# --------------------------------------------------------------------------- #
# Host-side helpers
# --------------------------------------------------------------------------- #
def _round_up(x, m):
    return ((x + m - 1) // m) * m


def _largest_aligned_divisor(H, th, align=128):
    """Largest divisor of H that is <= th and a multiple of `align`.

    Falls back to H for toy / oddly-sized hidden dims (single chunk).
    """
    if H <= th:
        return H
    t = (th // align) * align
    while t >= align:
        if H % t == 0:
            return t
        t -= align
    return H


def _select_config():
    """Generation-specific tile sizes / VMEM limits (perf-review derived)."""
    kind = ""
    try:
        kind = jax.devices()[0].device_kind.lower()
    except Exception:
        pass
    if "v5 lite" in kind or "v5lite" in kind or "v5e" in kind:
        # v5e roofline ~240 FLOP/byte -> tm=256 is balanced; 3-deep weight
        # pipeline hides the ~per-step weight DMA that matches MXU time.
        return dict(tm=256, th=512, vmem_limit_bytes=96 * 1024 * 1024,
                    weight_buffers=3)
    if "v6" in kind:
        # v6e needs ~650 FLOP/byte; tm=512 halves weight re-streaming and the
        # tile set fits comfortably in 128 MiB VMEM.
        return dict(tm=512, th=512, vmem_limit_bytes=100 * 1024 * 1024,
                    weight_buffers=2)
    if "v7" in kind:
        # v7x: 64 MiB VMEM per TensorCore -> keep headroom; shrink th not tm.
        # TODO(synk): cap tm so grid[0] >= 2 on small M to use both TCs.
        return dict(tm=512, th=256, vmem_limit_bytes=52 * 1024 * 1024,
                    weight_buffers=2)
    # Unknown / older chip: conservative config that fits every generation.
    return dict(tm=256, th=256, vmem_limit_bytes=48 * 1024 * 1024,
                weight_buffers=2)


def prepare_params(w_gu, b_gu, w_dn, b_dn):
    """One-time weight prep: split fused gate_up weight and cast to bf16.

    Doing this outside the per-call jitted path avoids an extra f32->bf16
    weight pass through HBM on every forward invocation.
    """
    H, C = w_dn.shape
    w_gate = jnp.asarray(w_gu[:, :H], jnp.bfloat16)
    w_up = jnp.asarray(w_gu[:, H:], jnp.bfloat16)
    w_down = jnp.asarray(w_dn, jnp.bfloat16)
    b_gate = jnp.asarray(b_gu[:H], jnp.float32).reshape(1, H)
    b_up = jnp.asarray(b_gu[H:], jnp.float32).reshape(1, H)
    b_down = jnp.asarray(b_dn, jnp.float32).reshape(1, C)
    return w_gate, w_up, b_gate, b_up, w_down, b_down


@functools.partial(jax.jit,
                   static_argnames=("tm", "th", "vmem_limit_bytes",
                                    "weight_buffers"))
def mlp_forward(x, w_gate, w_up, b_gate, b_up, w_down, b_down, *,
                tm=256, th=512, vmem_limit_bytes=64 * 1024 * 1024,
                weight_buffers=2):
    """x: (B, T, C) float32.  Returns (B, T, C) float32."""
    B, T, C = x.shape
    M = B * T
    H = w_down.shape[0]                    # hidden_dim = 4 * C

    # Row tile: clamp + pad for tiny inputs; tm is the arithmetic-intensity knob.
    tm_eff = min(tm, _round_up(M, 8))
    m_pad = _round_up(M, tm_eff)

    # Hidden chunk: largest 128-aligned divisor of H (never silently th=H for
    # big H unless H has no aligned divisor at all).
    th_eff = _largest_aligned_divisor(H, th)

    x2d = x.reshape(M, C)
    if m_pad != M:
        x2d = jnp.pad(x2d, ((0, m_pad - M), (0, 0)))
    x2d = x2d.astype(jnp.bfloat16)

    grid = (m_pad // tm_eff, H // th_eff)
    n_row_tiles = grid[0]

    # Honest cost estimate: weights are re-streamed once per row tile.
    bytes_accessed = (m_pad * C * 2                         # x (bf16)
                      + n_row_tiles * 3 * C * H * 2         # weight re-streaming
                      + n_row_tiles * (2 * H + C) * 4       # biases (f32)
                      + m_pad * C * 4)                      # output (f32)
    cost = pl.CostEstimate(flops=6 * m_pad * C * H,
                           transcendentals=m_pad * H,
                           bytes_accessed=bytes_accessed)

    def _wspec(shape, idx_map):
        if weight_buffers > 2:
            return pl.BlockSpec(shape, idx_map,
                                pipeline_mode=pl.Buffered(weight_buffers))
        return pl.BlockSpec(shape, idx_map)

    out2d = pl.pallas_call(
        swiglu_mlp_kernel,
        out_shape=jax.ShapeDtypeStruct((m_pad, C), jnp.float32),
        grid_spec=pltpu.PrefetchScalarGridSpec(
            num_scalar_prefetch=0,
            grid=grid,
            in_specs=[
                pl.BlockSpec((tm_eff, C), lambda i, h: (i, 0)),     # x row tile
                _wspec((C, th_eff), lambda i, h: (0, h)),           # W_gate chunk
                _wspec((C, th_eff), lambda i, h: (0, h)),           # W_up chunk
                pl.BlockSpec((1, th_eff), lambda i, h: (0, h)),     # b_gate chunk
                pl.BlockSpec((1, th_eff), lambda i, h: (0, h)),     # b_up chunk
                _wspec((th_eff, C), lambda i, h: (h, 0)),           # W_down chunk
                pl.BlockSpec((1, C), lambda i, h: (0, 0)),          # b_down
            ],
            out_specs=pl.BlockSpec((tm_eff, C), lambda i, h: (i, 0)),
        ),
        compiler_params=pltpu.CompilerParams(
            dimension_semantics=("parallel", "arbitrary"),
            vmem_limit_bytes=vmem_limit_bytes,
        ),
        cost_estimate=cost,
    )(x2d, w_gate, w_up, b_gate, b_up, w_down, b_down)

    return out2d[:M].reshape(B, T, C)


# --------------------------------------------------------------------------- #
# Parameter init / references
# --------------------------------------------------------------------------- #
def init_params(key, n_embd):
    """Matches torch init: normal(0, 2/sqrt(n_embd)) weights, zero biases."""
    hidden_dim = 4 * n_embd
    scale = 2.0 / (n_embd ** 0.5)
    k1, k2 = jax.random.split(key)
    # stored as (in, out) so the kernel does x @ W
    w_gu = scale * jax.random.normal(k1, (n_embd, 2 * hidden_dim), jnp.float32)
    b_gu = jnp.zeros((2 * hidden_dim,), jnp.float32)
    w_dn = scale * jax.random.normal(k2, (hidden_dim, n_embd), jnp.float32)
    b_dn = jnp.zeros((n_embd,), jnp.float32)
    return w_gu, b_gu, w_dn, b_dn


def mlp_reference_f32(x, w_gu, b_gu, w_dn, b_dn):
    """Pure-JAX f32 reference (torch semantics)."""
    combined = x @ w_gu + b_gu
    x1, x2 = jnp.split(combined, 2, axis=-1)
    hidden = jax.nn.silu(x2) * x1
    return hidden @ w_dn + b_dn


def mlp_reference_bf16(x, w_gu, b_gu, w_dn, b_dn):
    """Reference mimicking the kernel's bf16-operand / f32-accumulate math."""
    H = w_dn.shape[0]
    xb = x.astype(jnp.bfloat16)
    gate = jnp.dot(xb, w_gu[:, :H].astype(jnp.bfloat16),
                   preferred_element_type=jnp.float32) + b_gu[:H]
    up = jnp.dot(xb, w_gu[:, H:].astype(jnp.bfloat16),
                 preferred_element_type=jnp.float32) + b_gu[H:]
    hidden = gate * (up * jax.nn.sigmoid(up))
    return jnp.dot(hidden.astype(jnp.bfloat16), w_dn.astype(jnp.bfloat16),
                   preferred_element_type=jnp.float32) + b_dn


if __name__ == "__main__":
    # small shapes consistent with the module: batch=2, seq=8, n_embd=32
    B, T, C = 2, 8, 32
    key = jax.random.PRNGKey(0)
    kx, kp = jax.random.split(key)
    x = jax.random.normal(kx, (B, T, C), jnp.float32)
    w_gu, b_gu, w_dn, b_dn = init_params(kp, C)

    # One-time weight prep (split + bf16 cast) outside the hot path.
    params = prepare_params(w_gu, b_gu, w_dn, b_dn)
    params = jax.block_until_ready(params)

    cfg = _select_config()
    out = mlp_forward(x, *params, **cfg)
    out = jax.block_until_ready(out)
    assert out.shape == (B, T, C)

    ref16 = mlp_reference_bf16(x.reshape(-1, C), w_gu, b_gu, w_dn, b_dn).reshape(B, T, C)
    ref32 = mlp_reference_f32(x.reshape(-1, C), w_gu, b_gu, w_dn, b_dn).reshape(B, T, C)
    assert jnp.allclose(out, ref16, atol=5e-2, rtol=5e-2), "mismatch vs bf16 reference"
    assert jnp.allclose(out, ref32, atol=3e-1, rtol=1e-1), "mismatch vs f32 reference"
    print("KERNEL_OK")
</pallas_src>

<mosaic_0001>
module attributes {stable_mosaic.version = 11 : i64} {
  func.func @swiglu_mlp_kernel(%arg0: i32, %arg1: i32, %arg2: memref<16x32xbf16, #tpu.memory_space<vmem>>, %arg3: memref<32x128xbf16, #tpu.memory_space<vmem>>, %arg4: memref<32x128xbf16, #tpu.memory_space<vmem>>, %arg5: memref<1x128xf32, #tpu.memory_space<vmem>>, %arg6: memref<1x128xf32, #tpu.memory_space<vmem>>, %arg7: memref<128x32xbf16, #tpu.memory_space<vmem>>, %arg8: memref<1x32xf32, #tpu.memory_space<vmem>>, %arg9: memref<16x32xf32, #tpu.memory_space<vmem>>) attributes {dimension_semantics = [#tpu.dimension_semantics<parallel>, #tpu.dimension_semantics<arbitrary>], iteration_bounds = array<i64: 1, 1>, scalar_prefetch = 0 : i64, scratch_operands = 0 : i64, tpu.core_type = #tpu.core_type<tc>, window_params = [{transform_indices = @transform_0, window_bounds = array<i64: 16, 32>}, {transform_indices = @transform_1, window_bounds = array<i64: 32, 128>}, {transform_indices = @transform_2, window_bounds = array<i64: 32, 128>}, {transform_indices = @transform_3, window_bounds = array<i64: 1, 128>}, {transform_indices = @transform_4, window_bounds = array<i64: 1, 128>}, {transform_indices = @transform_5, window_bounds = array<i64: 128, 32>}, {pipeline_mode = #tpu.pipeline_mode<synchronous>, transform_indices = @transform_6, window_bounds = array<i64: 1, 32>}, {transform_indices = @transform_7, window_bounds = array<i64: 16, 32>}]} {
    %c0 = arith.constant 0 : index
    %c0_0 = arith.constant 0 : index
    %0 = vector.load %arg2[%c0, %c0_0] : memref<16x32xbf16, #tpu.memory_space<vmem>>, vector<16x32xbf16>
    %c0_1 = arith.constant 0 : index
    %c0_2 = arith.constant 0 : index
    %1 = vector.load %arg3[%c0_1, %c0_2] : memref<32x128xbf16, #tpu.memory_space<vmem>>, vector<32x128xbf16>
    %cst = arith.constant dense<0.000000e+00> : vector<16x128xf32>
    %2 = tpu.matmul %0, %1, %cst {dimension_numbers = #tpu.dot_dimension_numbers<[1], [0], [0], [1], [0, 0, 1, 1], [], []>} : vector<16x32xbf16>, vector<32x128xbf16>, vector<16x128xf32> -> vector<16x128xf32>
    %c0_3 = arith.constant 0 : index
    %c0_4 = arith.constant 0 : index
    %3 = vector.load %arg5[%c0_3, %c0_4] : memref<1x128xf32, #tpu.memory_space<vmem>>, vector<1x128xf32>
    %4 = vector.broadcast %3 : vector<1x128xf32> to vector<16x128xf32>
    %5 = arith.addf %2, %4 : vector<16x128xf32>
    %c0_5 = arith.constant 0 : index
    %c0_6 = arith.constant 0 : index
    %6 = vector.load %arg4[%c0_5, %c0_6] : memref<32x128xbf16, #tpu.memory_space<vmem>>, vector<32x128xbf16>
    %cst_7 = arith.constant dense<0.000000e+00> : vector<16x128xf32>
    %7 = tpu.matmul %0, %6, %cst_7 {dimension_numbers = #tpu.dot_dimension_numbers<[1], [0], [0], [1], [0, 0, 1, 1], [], []>} : vector<16x32xbf16>, vector<32x128xbf16>, vector<16x128xf32> -> vector<16x128xf32>
    %c0_8 = arith.constant 0 : index
    %c0_9 = arith.constant 0 : index
    %8 = vector.load %arg6[%c0_8, %c0_9] : memref<1x128xf32, #tpu.memory_space<vmem>>, vector<1x128xf32>
    %9 = vector.broadcast %8 : vector<1x128xf32> to vector<16x128xf32>
    %10 = arith.addf %7, %9 : vector<16x128xf32>
    %11 = arith.negf %10 : vector<16x128xf32>
    %12 = math.exp %11 : vector<16x128xf32>
    %cst_10 = arith.constant 1.000000e+00 : f32
    %13 = vector.broadcast %cst_10 : f32 to vector<16x128xf32>
    %14 = arith.addf %13, %12 : vector<16x128xf32>
    %15 = arith.divf %13, %14 : vector<16x128xf32>
    %16 = arith.mulf %10, %15 : vector<16x128xf32>
    %17 = arith.mulf %5, %16 : vector<16x128xf32>
    %18 = arith.truncf %17 : vector<16x128xf32> to vector<16x128xbf16>
    %c0_11 = arith.constant 0 : index
    %c0_12 = arith.constant 0 : index
    %19 = vector.load %arg7[%c0_11, %c0_12] : memref<128x32xbf16, #tpu.memory_space<vmem>>, vector<128x32xbf16>
    %cst_13 = arith.constant dense<0.000000e+00> : vector<16x32xf32>
    %20 = tpu.matmul %18, %19, %cst_13 {dimension_numbers = #tpu.dot_dimension_numbers<[1], [0], [0], [1], [0, 0, 1, 1], [], []>} : vector<16x128xbf16>, vector<128x32xbf16>, vector<16x32xf32> -> vector<16x32xf32>
    %c0_i32 = arith.constant 0 : i32
    %21 = arith.cmpi eq, %arg1, %c0_i32 : i32
    %22 = arith.extui %21 : i1 to i32
    %c0_i32_14 = arith.constant 0 : i32
    %23 = arith.cmpi ne, %22, %c0_i32_14 : i32
    scf.if %23 {
      %c0_17 = arith.constant 0 : index
      %c0_18 = arith.constant 0 : index
      %27 = vector.load %arg8[%c0_17, %c0_18] : memref<1x32xf32, #tpu.memory_space<vmem>>, vector<1x32xf32>
      %28 = vector.broadcast %27 : vector<1x32xf32> to vector<16x32xf32>
      %29 = arith.addf %20, %28 : vector<16x32xf32>
      %c0_19 = arith.constant 0 : index
      %c0_20 = arith.constant 0 : index
      %30 = vector.load %arg9[%c0_19, %c0_20] : memref<16x32xf32, #tpu.memory_space<vmem>>, vector<16x32xf32>
      tpu.vector_store %arg9[%c0_19, %c0_20], %29 {strides = array<i32>} : memref<16x32xf32, #tpu.memory_space<vmem>>, vector<16x32xf32>,
    } else {
    }
    %c0_i32_15 = arith.constant 0 : i32
    %24 = arith.cmpi sgt, %arg1, %c0_i32_15 : i32
    %25 = arith.extui %24 : i1 to i32
    %c0_i32_16 = arith.constant 0 : i32
    %26 = arith.cmpi ne, %25, %c0_i32_16 : i32
    scf.if %26 {
      %c0_17 = arith.constant 0 : index
      %c0_18 = arith.constant 0 : index
      %27 = vector.load %arg9[%c0_17, %c0_18] : memref<16x32xf32, #tpu.memory_space<vmem>>, vector<16x32xf32>
      %28 = arith.addf %27, %20 : vector<16x32xf32>
      %c0_19 = arith.constant 0 : index
      %c0_20 = arith.constant 0 : index
      %29 = vector.load %arg9[%c0_19, %c0_20] : memref<16x32xf32, #tpu.memory_space<vmem>>, vector<16x32xf32>
      tpu.vector_store %arg9[%c0_19, %c0_20], %28 {strides = array<i32>} : memref<16x32xf32, #tpu.memory_space<vmem>>, vector<16x32xf32>,
    } else {
    }
    return
  }
  func.func @transform_0(%arg0: i32, %arg1: i32) -> (i32, i32) {
    %c0_i32 = arith.constant 0 : i32
    %c0_i32_0 = arith.constant 0 : i32
    return %arg0, %c0_i32 : i32, i32
  }
  func.func @transform_1(%arg0: i32, %arg1: i32) -> (i32, i32) {
    %c0_i32 = arith.constant 0 : i32
    %c0_i32_0 = arith.constant 0 : i32
    return %c0_i32, %arg1 : i32, i32
  }
  func.func @transform_2(%arg0: i32, %arg1: i32) -> (i32, i32) {
    %c0_i32 = arith.constant 0 : i32
    %c0_i32_0 = arith.constant 0 : i32
    return %c0_i32, %arg1 : i32, i32
  }
  func.func @transform_3(%arg0: i32, %arg1: i32) -> (i32, i32) {
    %c0_i32 = arith.constant 0 : i32
    %c0_i32_0 = arith.constant 0 : i32
    return %c0_i32, %arg1 : i32, i32
  }
  func.func @transform_4(%arg0: i32, %arg1: i32) -> (i32, i32) {
    %c0_i32 = arith.constant 0 : i32
    %c0_i32_0 = arith.constant 0 : i32
    return %c0_i32, %arg1 : i32, i32
  }
  func.func @transform_5(%arg0: i32, %arg1: i32) -> (i32, i32) {
    %c0_i32 = arith.constant 0 : i32
    %c0_i32_0 = arith.constant 0 : i32
    return %arg1, %c0_i32 : i32, i32
  }
  func.func @transform_6(%arg0: i32, %arg1: i32) -> (i32, i32) {
    %c0_i32 = arith.constant 0 : i32
    %c0_i32_0 = arith.constant 0 : i32
    %c0_i32_1 = arith.constant 0 : i32
    return %c0_i32, %c0_i32_0 : i32, i32
  }
  func.func @transform_7(%arg0: i32, %arg1: i32) -> (i32, i32) {
    %c0_i32 = arith.constant 0 : i32
    %c0_i32_0 = arith.constant 0 : i32
    return %arg0, %c0_i32 : i32, i32
  }
}

</mosaic_0001>

<llo_original>
// kernel: mlp_forward.1
$region0: #{mlp_forward.1}
  #allocation0 [shape = 'u32[]', space=smem, size = 0x4, offset = 0x4, fixed_abs, tag = 'smem constant byte address 0x4 - core index']
  #allocation1 [shape = 'u32[144,128]{1,0:T(1,128)}', space=vmem, size = 0x12000, scoped, tag = 'internal scratch']
  %s0 = inlined_call_operand.vmem [shape: bf16[16,32], index: 0, kind: input, shape index: {}]
  %s1 = inlined_call_operand.vmem [shape: bf16[32,128], index: 1, kind: input, shape index: {}]
  %s2 = inlined_call_operand.vmem [shape: bf16[32,128], index: 2, kind: input, shape index: {}]
  %s3 = inlined_call_operand.vmem [shape: f32[1,128], index: 3, kind: input, shape index: {}]
  %s4 = inlined_call_operand.vmem [shape: f32[1,128], index: 4, kind: input, shape index: {}]
  %s5 = inlined_call_operand.vmem [shape: bf16[128,32], index: 5, kind: input, shape index: {}]
  %s6 = inlined_call_operand.vmem [shape: f32[1,32], index: 6, kind: input, shape index: {}]
  %s7 = inlined_call_operand.hbm [shape: f32[16,32], index: 7, kind: output, shape index: {}]
  %s8 = sld [smem:[#allocation0]]
  $region46: #{mlp_forward.1} parent=0
    _
  %s10 = ssub.s32 1, %s8
  %s11 = scalar_select 0, %s10, %s8
  $region1: #{mlp_forward.1} parent=0
    #allocation2 [shape = 'u8[8192]{0}', space=vmem, size = 0x2000, scoped, tag = 'output window, operand 0, single buffered']
    #allocation3 [shape = 's32[1]{0}', space=sflag, size = 0x4, scoped, tag = 'scoped memory for mlp_forward.1']
    %12 = vsyncpa [#allocation3], 0
    // Predicated region
    $region2: #{mlp_forward.1} parent=1 // pred_check
      _
    $region3: #{mlp_forward.1} parent=1 // pred_check_branch
      %14 = sbr.rel (0) target = $region5
    $region4: #{mlp_forward.1} parent=1 // pred_region
      _
    $region5: #{mlp_forward.1} parent=1 // pred_fallthru
      _
    // Predicated region
    $region6: #{mlp_forward.1} parent=1 // pred_check
      _
    $region7: #{mlp_forward.1} parent=1 // pred_check_branch
      %16 = sbr.rel (0) target = $region9
    $region8: #{mlp_forward.1} parent=1 // pred_region
      _
    $region9: #{mlp_forward.1} parent=1 // pred_fallthru
      _
    // Predicated region
    $region10: #{mlp_forward.1} parent=1 // pred_check
      _
    $region11: #{mlp_forward.1} parent=1 // pred_check_branch
      %18 = sbr.rel (0) target = $region13
    $region12: #{mlp_forward.1} parent=1 // pred_region
      _
    $region13: #{mlp_forward.1} parent=1 // pred_fallthru
      _
    // Predicated region
    $region14: #{mlp_forward.1} parent=1 // pred_check
      _
    $region15: #{mlp_forward.1} parent=1 // pred_check_branch
      %20 = sbr.rel (0) target = $region17
    $region16: #{mlp_forward.1} parent=1 // pred_region
      _
    $region17: #{mlp_forward.1} parent=1 // pred_fallthru
      _
    // Predicated region
    $region18: #{mlp_forward.1} parent=1 // pred_check
      _
    $region19: #{mlp_forward.1} parent=1 // pred_check_branch
      %22 = sbr.rel (0) target = $region21
    $region20: #{mlp_forward.1} parent=1 // pred_region
      _
    $region21: #{mlp_forward.1} parent=1 // pred_fallthru
      _
    // Predicated region
    $region22: #{mlp_forward.1} parent=1 // pred_check
      _
    $region23: #{mlp_forward.1} parent=1 // pred_check_branch
      %24 = sbr.rel (0) target = $region25
    $region24: #{mlp_forward.1} parent=1 // pred_region
      _
    $region25: #{mlp_forward.1} parent=1 // pred_fallthru
      _
    // Predicated region
    $region26: #{mlp_forward.1} parent=1 // pred_check
      _
    $region27: #{mlp_forward.1} parent=1 // pred_check_branch
      %26 = sbr.rel (0) target = $region29
    $region28: #{mlp_forward.1} parent=1 // pred_region
      _
    $region29: #{mlp_forward.1} parent=1 // pred_fallthru
      _
    %v28 = vld [vmem:[%s0] sm:$0xf]
    %v29 = vld [vmem:[%s0 + $0x4] sm:$0xf]
    %v30 = vld [vmem:[%s1] sm:$0xf]
    %v31 = vld [vmem:[%s1 + $0x4] sm:$0xf]
    %v32 = vld [vmem:[%s1 + $0x8] sm:$0xf]
    %v33 = vld [vmem:[%s1 + $0xc] sm:$0xf]
    %v34 = vld [vmem:[%s3] sm:$0x1]
    %v36 = vlaneseq
    %v37 = vshrl.u32 %v36, 7
    %v38 = vsub.s32 0, %v37
    %v39 = vrot.slane %v34, %v38
    %v43 = vunpack.c.l.b16 %v28
    %v44 = vunpack.c.l.b16 %v29
    %v45 = vpack.c.b16 %v44, %v43
    %v50 = vunpack.c.l.b16 %v30
    %v51 = vunpack.c.l.b16 %v31
    %v52 = vunpack.c.l.b16 %v32
    %v53 = vunpack.c.l.b16 %v33
    %v54 = vpack.c.b16 %v51, %v50
    %v55 = vpack.c.b16 %v53, %v52
    %vm58 = vcmask 261120
    %v60 = vsel %vm58, %v45, 0
    %62 = vmatprep.subr.bf16.mxu0 0
    %63 = vmatpush1.bf16.msra.mxu0 %v54
    %64 = vmatprep.subr.bf16.mxu0 0
    %65 = vmatpush1.bf16.msra.mxu0 %v55
    %66 = vmatprep.subr.bf16.mxu0 0
    %67 = vmatpush1.bf16.msra.mxu0 0
    %68 = vmatprep.subr.bf16.mxu0 0
    %69 = vmatpush1.bf16.msra.mxu0 0
    %70 = vmatprep.subr.bf16.mxu0 0
    %71 = vmatpush1.bf16.msra.mxu0 0
    %72 = vmatprep.subr.bf16.mxu0 0
    %73 = vmatpush1.bf16.msra.mxu0 0
    %74 = vmatprep.subr.bf16.mxu0 0
    %75 = vmatpush1.bf16.msra.mxu0 0
    %76 = vmatprep.subr.bf16.mxu0 0
    %77 = vmatpush1.bf16.msra.mxu0 0
    %78 = vmatprep.subr.bf16.mxu0 0
    %79 = vmatpush1.bf16.msra.mxu0 0
    %80 = vmatprep.subr.bf16.mxu0 0
    %81 = vmatpush1.bf16.msra.mxu0 0
    %82 = vmatprep.subr.bf16.mxu0 0
    %83 = vmatpush1.bf16.msra.mxu0 0
    %84 = vmatprep.subr.bf16.mxu0 0
    %85 = vmatpush1.bf16.msra.mxu0 0
    %86 = vmatprep.subr.bf16.mxu0 0
    %87 = vmatpush1.bf16.msra.mxu0 0
    %88 = vmatprep.subr.bf16.mxu0 0
    %89 = vmatpush1.bf16.msra.mxu0 0
    %90 = vmatprep.subr.bf16.mxu0 0
    %91 = vmatpush1.bf16.msra.mxu0 0
    %92 = vmatprep.subr.bf16.mxu0 0
    %93 = vmatpush1.bf16.msra.mxu0 0
    %94 = vmatprep.mubr.bf16.mxu0 0
    %95 = vmatmul.mubr.bf16.gmra.mrb[0].mxu0 %v60
    %v96 = vpop.f32.mrb[0].mxu0
    %v97 = vadd.f32 %v39, %v96
    %v98 = vpop.f32.mrb[0].mxu0
    %v99 = vpop.f32.mrb[0].mxu0
    %v100 = vadd.f32 %v39, %v99
    %v101 = vpop.f32.mrb[0].mxu0
    %102 = vdwg.mxu0
    %v103 = vld [vmem:[%s2] sm:$0xf]
    %v104 = vld [vmem:[%s2 + $0x4] sm:$0xf]
    %v105 = vld [vmem:[%s2 + $0x8] sm:$0xf]
    %v106 = vld [vmem:[%s2 + $0xc] sm:$0xf]
    %v107 = vld [vmem:[%s4] sm:$0x1]
    %v109 = vlaneseq
    %v110 = vshrl.u32 %v109, 7
    %v111 = vsub.s32 0, %v110
    %v112 = vrot.slane %v107, %v111
    %v118 = vunpack.c.l.b16 %v103
    %v119 = vunpack.c.l.b16 %v104
    %v120 = vunpack.c.l.b16 %v105
    %v121 = vunpack.c.l.b16 %v106
    %v122 = vpack.c.b16 %v119, %v118
    %v123 = vpack.c.b16 %v121, %v120
    %126 = vmatprep.subr.bf16.mxu0 0
    %127 = vmatpush1.bf16.msra.mxu0 %v122
    %128 = vmatprep.subr.bf16.mxu0 0
    %129 = vmatpush1.bf16.msra.mxu0 %v123
    %130 = vmatprep.subr.bf16.mxu0 0
    %131 = vmatpush1.bf16.msra.mxu0 0
    %132 = vmatprep.subr.bf16.mxu0 0
    %133 = vmatpush1.bf16.msra.mxu0 0
    %134 = vmatprep.subr.bf16.mxu0 0
    %135 = vmatpush1.bf16.msra.mxu0 0
    %136 = vmatprep.subr.bf16.mxu0 0
    %137 = vmatpush1.bf16.msra.mxu0 0
    %138 = vmatprep.subr.bf16.mxu0 0
    %139 = vmatpush1.bf16.msra.mxu0 0
    %140 = vmatprep.subr.bf16.mxu0 0
    %141 = vmatpush1.bf16.msra.mxu0 0
    %142 = vmatprep.subr.bf16.mxu0 0
    %143 = vmatpush1.bf16.msra.mxu0 0
    %144 = vmatprep.subr.bf16.mxu0 0
    %145 = vmatpush1.bf16.msra.mxu0 0
    %146 = vmatprep.subr.bf16.mxu0 0
    %147 = vmatpush1.bf16.msra.mxu0 0
    %148 = vmatprep.subr.bf16.mxu0 0
    %149 = vmatpush1.bf16.msra.mxu0 0
    %150 = vmatprep.subr.bf16.mxu0 0
    %151 = vmatpush1.bf16.msra.mxu0 0
    %152 = vmatprep.subr.bf16.mxu0 0
    %153 = vmatpush1.bf16.msra.mxu0 0
    %154 = vmatprep.subr.bf16.mxu0 0
    %155 = vmatpush1.bf16.msra.mxu0 0
    %156 = vmatprep.subr.bf16.mxu0 0
    %157 = vmatpush1.bf16.msra.mxu0 0
    %158 = vmatprep.mubr.bf16.mxu0 0
    %159 = vmatmul.mubr.bf16.gmra.mrb[0].mxu0 %v60
    %v160 = vpop.f32.mrb[0].mxu0
    %v161 = vadd.f32 %v112, %v160
    %v162 = vpop.f32.mrb[0].mxu0
    %v163 = vpop.f32.mrb[0].mxu0
    %v164 = vadd.f32 %v112, %v163
    %v165 = vpop.f32.mrb[0].mxu0
    %166 = vdwg.mxu0
    %v167 = vxor.u32 %v161, 2147483648
    %v168 = vxor.u32 %v164, 2147483648
    %v169 = vmul.f32 %v167, 1.442695
    %v170 = vpow.pop %v169
    %v171 = vmul.f32 %v168, 1.442695
    %v172 = vpow.pop %v171
    %v173 = vadd.f32 %v170, 1.0
    %v174 = vadd.f32 %v172, 1.0
    %v175 = vrcp.pop %v173
    %v176 = vmul.f32 1.0, %v175
    %v177 = vrcp.pop %v174
    %v178 = vmul.f32 1.0, %v177
    %v179 = vmul.f32 %v161, %v176
    %v180 = vmul.f32 %v164, %v178
    %v181 = vmul.f32 %v97, %v179
    %v182 = vmul.f32 %v100, %v180
    %v183 = vpack.c.bf16 %v182, %v181
    %v184 = vld [vmem:[%s5] sm:$0xf]
    %v185 = vld [vmem:[%s5 + $0x4] sm:$0xf]
    %v186 = vld [vmem:[%s5 + $0x8] sm:$0xf]
    %v187 = vld [vmem:[%s5 + $0xc] sm:$0xf]
    %v188 = vld [vmem:[%s5 + $0x10] sm:$0xf]
    %v189 = vld [vmem:[%s5 + $0x14] sm:$0xf]
    %v190 = vld [vmem:[%s5 + $0x18] sm:$0xf]
    %v191 = vld [vmem:[%s5 + $0x1c] sm:$0xf]
    %v192 = vld [vmem:[%s5 + $0x20] sm:$0xf]
    %v193 = vld [vmem:[%s5 + $0x24] sm:$0xf]
    %v194 = vld [vmem:[%s5 + $0x28] sm:$0xf]
    %v195 = vld [vmem:[%s5 + $0x2c] sm:$0xf]
    %v196 = vld [vmem:[%s5 + $0x30] sm:$0xf]
    %v197 = vld [vmem:[%s5 + $0x34] sm:$0xf]
    %v198 = vld [vmem:[%s5 + $0x38] sm:$0xf]
    %v199 = vld [vmem:[%s5 + $0x3c] sm:$0xf]
    %v216 = vunpack.c.l.b16 %v184
    %v217 = vunpack.c.l.b16 %v185
    %v218 = vunpack.c.l.b16 %v186
    %v219 = vunpack.c.l.b16 %v187
    %v220 = vunpack.c.l.b16 %v188
    %v221 = vunpack.c.l.b16 %v189
    %v222 = vunpack.c.l.b16 %v190
    %v223 = vunpack.c.l.b16 %v191
    %v224 = vunpack.c.l.b16 %v192
    %v225 = vunpack.c.l.b16 %v193
    %v226 = vunpack.c.l.b16 %v194
    %v227 = vunpack.c.l.b16 %v195
    %v228 = vunpack.c.l.b16 %v196
    %v229 = vunpack.c.l.b16 %v197
    %v230 = vunpack.c.l.b16 %v198
    %v231 = vunpack.c.l.b16 %v199
    %v232 = vpack.c.b16 %v217, %v216
    %v233 = vpack.c.b16 %v219, %v218
    %v234 = vpack.c.b16 %v221, %v220
    %v235 = vpack.c.b16 %v223, %v222
    %v236 = vpack.c.b16 %v225, %v224
    %v237 = vpack.c.b16 %v227, %v226
    %v238 = vpack.c.b16 %v229, %v228
    %v239 = vpack.c.b16 %v231, %v230
    %248 = vmatprep.subr.bf16.mxu0 0
    %249 = vmatpush1.bf16.msra.mxu0 %v232
    %250 = vmatprep.subr.bf16.mxu0 0
    %251 = vmatpush1.bf16.msra.mxu0 %v233
    %252 = vmatprep.subr.bf16.mxu0 0
    %253 = vmatpush1.bf16.msra.mxu0 %v234
    %254 = vmatprep.subr.bf16.mxu0 0
    %255 = vmatpush1.bf16.msra.mxu0 %v235
    %256 = vmatprep.subr.bf16.mxu0 0
    %257 = vmatpush1.bf16.msra.mxu0 %v236
    %258 = vmatprep.subr.bf16.mxu0 0
    %259 = vmatpush1.bf16.msra.mxu0 %v237
    %260 = vmatprep.subr.bf16.mxu0 0
    %261 = vmatpush1.bf16.msra.mxu0 %v238
    %262 = vmatprep.subr.bf16.mxu0 0
    %263 = vmatpush1.bf16.msra.mxu0 %v239
    %264 = vmatprep.subr.bf16.mxu0 0
    %265 = vmatpush1.bf16.msra.mxu0 0
    %266 = vmatprep.subr.bf16.mxu0 0
    %267 = vmatpush1.bf16.msra.mxu0 0
    %268 = vmatprep.subr.bf16.mxu0 0
    %269 = vmatpush1.bf16.msra.mxu0 0
    %270 = vmatprep.subr.bf16.mxu0 0
    %271 = vmatpush1.bf16.msra.mxu0 0
    %272 = vmatprep.subr.bf16.mxu0 0
    %273 = vmatpush1.bf16.msra.mxu0 0
    %274 = vmatprep.subr.bf16.mxu0 0
    %275 = vmatpush1.bf16.msra.mxu0 0
    %276 = vmatprep.subr.bf16.mxu0 0
    %277 = vmatpush1.bf16.msra.mxu0 0
    %278 = vmatprep.subr.bf16.mxu0 0
    %279 = vmatpush1.bf16.msra.mxu0 0
    %280 = vmatprep.mubr.bf16.mxu0 0
    %281 = vmatmul.mubr.bf16.gmra.mrb[0].mxu0 %v183
    %v282 = vpop.f32.mrb[0].mxu0
    %v283 = vadd.f32 0.0, %v282
    %v284 = vpop.f32.mrb[0].mxu0
    %v285 = vpop.f32.mrb[0].mxu0
    %v286 = vadd.f32 0.0, %v285
    %v287 = vpop.f32.mrb[0].mxu0
    %288 = vdwg.mxu0
    %p289 = scmp.eq.s32.totalorder 0, 0
    // Predicated region
    $region30: #{mlp_forward.1} parent=1 // pred_check
      %p290 = pneg %p289
    $region31: #{mlp_forward.1} parent=1 // pred_check_branch
      %292 = sbr.rel (%p290) target = $region33
    $region32: #{mlp_forward.1} parent=1 // pred_region
      %v293 = vld [vmem:[%s6] sm:$0x1]
      %v295 = vlaneseq
      %v296 = vshrl.u32 %v295, 7
      %v297 = vsub.s32 0, %v296
      %v298 = vrot.slane %v293, %v297
      %v300 = vadd.f32 %v283, %v298
      %v301 = vadd.f32 %v286, %v298
      %302 = vst.msk [vmem:[#allocation2] sm:$0xff] %vm58, %v300
      %303 = vst.msk [vmem:[#allocation2 + $0x8] sm:$0xff] %vm58, %v301
    $region33: #{mlp_forward.1} parent=1 // pred_fallthru
      _
    %p304 = scmp.gt.s32.totalorder 0, 0
    // Predicated region
    $region34: #{mlp_forward.1} parent=1 // pred_check
      %p305 = pneg %p304
    $region35: #{mlp_forward.1} parent=1 // pred_check_branch
      %307 = sbr.rel (%p305) target = $region37
    $region36: #{mlp_forward.1} parent=1 // pred_region
      %v308 = vld [vmem:[#allocation2] sm:$0xff]
      %v309 = vld [vmem:[#allocation2 + $0x8] sm:$0xff]
      %v310 = vadd.f32 %v308, %v283
      %v311 = vadd.f32 %v309, %v286
      %312 = vst.msk [vmem:[#allocation2] sm:$0xff] %vm58, %v310
      %313 = vst.msk [vmem:[#allocation2 + $0x8] sm:$0xff] %vm58, %v311
    $region37: #{mlp_forward.1} parent=1 // pred_fallthru
      _
    // Predicated region
    $region38: #{mlp_forward.1} parent=1 // pred_check
      _
    $region39: #{mlp_forward.1} parent=1 // pred_check_branch
      %315 = sbr.rel (0) target = $region41
    $region40: #{mlp_forward.1} parent=1 // pred_region
      %s317 = ssub.s32 256, 256
      %318 = vsyncadd [#allocation3], %s317
      %s319 = sshll.u32 [#allocation2], 4
      %s320 = int_to_ptr.vmem [resolvable:$true] %s319
      %325 = dma.vmem_to_hbm [thread:$0]  %s320, 256, %s7, [#allocation3], 128, 128, 8
    $region41: #{mlp_forward.1} parent=1 // pred_fallthru
      _
    // Predicated region
    $region42: #{mlp_forward.1} parent=1 // pred_check
      _
    $region43: #{mlp_forward.1} parent=1 // pred_check_branch
      %327 = sbr.rel (0) target = $region45
    $region44: #{mlp_forward.1} parent=1 // pred_region
      %328 = dma.done [#allocation3], 256
    $region45: #{mlp_forward.1} parent=1 // pred_fallthru
      _
    %329 = vsyncpa [#allocation3], 1

</llo_original>
